<compile_context>
chip_gen: v5e
topology: v5e:2x2
jax: 0.10.0
libtpu: 0.0.40
codegen_flags: <defaults>
</compile_context>

<pallas_src>
import functools

import numpy as np
import jax
import jax.numpy as jnp
from jax import lax
from jax.experimental import pallas as pl
from jax.experimental.pallas import tpu as pltpu

NEG_SLOPE = 0.17976282
STRIDE1, PAD1 = 2, 1     # conv1 (5x5)
STRIDE2, PAD2 = 2, 1     # conv2 (1x1)
LANES = 128              # lane-dense padded output-channel width


def _round_up(x, m):
    return (x + m - 1) // m * m


def _leaky(v):
    return jnp.where(v > 0, v, v * NEG_SLOPE)


def _fused_kernel(p_ref, w1_ref, b1_ref, sel_ref, w2_ref, b2_ref, o_ref):
    """One grid step == one image. bf16 MXU operands, f32 accumulation."""
    p = p_ref[0].astype(jnp.bfloat16)                         # (M1p, Kp1)
    w1 = w1_ref[...].astype(jnp.bfloat16)                     # (Kp1, 128)
    # conv1 as im2col matmul + bias + leaky-relu
    y1 = jnp.dot(p, w1, preferred_element_type=jnp.float32)   # (M1p, 128) f32
    y1 = _leaky(y1 + b1_ref[...])
    # conv2's 1x1 / stride-2 / pad-1 spatial gather as a 0/1 selection matmul
    # (per-image selector; out-of-bounds pad rows select nothing -> 0 -> b2).
    t = jnp.dot(sel_ref[...], y1.astype(jnp.bfloat16),
                preferred_element_type=jnp.float32)           # (M2p, 128)
    y2 = jnp.dot(t.astype(jnp.bfloat16),
                 w2_ref[...].astype(jnp.bfloat16),
                 preferred_element_type=jnp.float32)          # (M2p, 128)
    o_ref[0] = _leaky(y2 + b2_ref[...])


def fused_double_conv_lrelu(x, w1, b1, w2, b2):
    """x: (N, C, H, W) f32. Returns leaky(conv2(leaky(conv1(x)))) in NCHW f32."""
    N, C, H, W = x.shape
    OC1, IC1, KH, KW = w1.shape
    OC2, IC2 = w2.shape[0], w2.shape[1]
    assert C == IC1 and OC1 == IC2, (C, IC1, OC1, IC2)
    assert OC1 <= LANES and OC2 <= LANES

    OH1 = (H + 2 * PAD1 - KH) // STRIDE1 + 1
    OW1 = (W + 2 * PAD1 - KW) // STRIDE1 + 1
    OH2 = (OH1 + 2 * PAD2 - 1) // STRIDE2 + 1
    OW2 = (OW1 + 2 * PAD2 - 1) // STRIDE2 + 1

    M1 = OH1 * OW1                 # conv1 output rows per image
    M2 = OH2 * OW2                 # conv2 output rows per image
    K1 = C * KH * KW
    M1p = _round_up(max(M1, 8), LANES)   # also lane dim of per-image selector
    Kp1 = _round_up(K1, LANES)
    M2p = _round_up(max(M2, 8), 8)

    # ---- im2col as a single fused XLA op (feature ordering (C,KH,KW) matches
    # PyTorch's OIHW flattening; NHWC out-spec -> free reshape, no transpose).
    patches = lax.conv_general_dilated_patches(
        x, (KH, KW), (STRIDE1, STRIDE1), ((PAD1, PAD1), (PAD1, PAD1)),
        dimension_numbers=("NCHW", "OIHW", "NHWC"))           # (N, OH1, OW1, K1)
    patches = patches.reshape(N, M1, K1)
    patches = jnp.pad(patches, ((0, 0), (0, M1p - M1), (0, Kp1 - K1)))

    # Weights/biases, lane-padded once (tiny); bf16 casts happen in-kernel.
    w1m = jnp.pad(w1.reshape(OC1, K1).T, ((0, Kp1 - K1), (0, LANES - OC1)))
    b1p = jnp.pad(b1, (0, LANES - OC1)).reshape(1, LANES)
    w2m = jnp.pad(w2.reshape(OC2, OC1).T, ((0, LANES - OC1), (0, LANES - OC2)))
    b2p = jnp.pad(b2, (0, LANES - OC2)).reshape(1, LANES)

    # Per-image (block-diagonal) 0/1 selector, shared by every batch element.
    # Built with numpy at trace time -> a constant, zero runtime glue.
    sel_np = np.zeros((M2p, M1p), np.float32)
    for oh in range(OH2):
        for ow in range(OW2):
            h = oh * STRIDE2 - PAD2
            w_ = ow * STRIDE2 - PAD2
            if 0 <= h < OH1 and 0 <= w_ < OW1:
                sel_np[oh * OW2 + ow, h * OW1 + w_] = 1.0
    sel = jnp.asarray(sel_np, jnp.bfloat16)

    flops = 2 * N * (M1p * Kp1 * LANES + M2p * M1p * LANES + M2p * LANES * LANES)
    bytes_accessed = (4 * (N * M1p * Kp1 + Kp1 * LANES + LANES
                           + LANES * LANES + LANES + N * M2p * LANES)
                      + 2 * M2p * M1p)

    out = pl.pallas_call(
        _fused_kernel,
        out_shape=jax.ShapeDtypeStruct((N, M2p, LANES), jnp.float32),
        grid_spec=pl.GridSpec(
            grid=(N,),
            in_specs=[
                pl.BlockSpec((1, M1p, Kp1), lambda i: (i, 0, 0)),   # patches
                pl.BlockSpec((Kp1, LANES), lambda i: (0, 0)),       # w1
                pl.BlockSpec((1, LANES), lambda i: (0, 0)),         # b1
                pl.BlockSpec((M2p, M1p), lambda i: (0, 0)),         # selector
                pl.BlockSpec((LANES, LANES), lambda i: (0, 0)),     # w2
                pl.BlockSpec((1, LANES), lambda i: (0, 0)),         # b2
            ],
            out_specs=pl.BlockSpec((1, M2p, LANES), lambda i: (i, 0, 0)),
        ),
        compiler_params=pltpu.CompilerParams(
            dimension_semantics=("parallel",),
            vmem_limit_bytes=32 * 1024 * 1024),
        cost_estimate=pl.CostEstimate(
            flops=flops, transcendentals=0, bytes_accessed=bytes_accessed),
    )(patches, w1m, b1p, sel, w2m, b2p)

    # Single layout conversion to NCHW, once, at the very end.
    return out[:, :M2, :OC2].reshape(N, OH2, OW2, OC2).transpose(0, 3, 1, 2)


def init_params():
    k = jax.random.PRNGKey(42)
    k1, k2, k3, k4 = jax.random.split(k, 4)
    # conv1: Conv2d(10, 20, kernel=5, stride=2, padding=1)
    w1 = jax.random.normal(k1, (20, 10, 5, 5), jnp.float32) * 0.05
    b1 = jax.random.normal(k2, (20,), jnp.float32) * 0.05
    # conv2: declared Conv2d(100, 2, 1, 2, 1); in_channels set to 20 (see TODO)
    w2 = jax.random.normal(k3, (2, 20, 1, 1), jnp.float32) * 0.05
    b2 = jax.random.normal(k4, (2,), jnp.float32) * 0.05
    return dict(w1=w1, b1=b1, w2=w2, b2=b2)


@functools.partial(jax.jit, static_argnames=())
def model_forward(x, w1, b1, w2, b2):
    return fused_double_conv_lrelu(x, w1, b1, w2, b2)


def _reference(x, w1, b1, w2, b2):
    """Pure-JAX f32 reference of the same forward chain."""
    dn1 = lax.conv_dimension_numbers(x.shape, w1.shape, ("NCHW", "OIHW", "NCHW"))
    v1 = lax.conv_general_dilated(
        x, w1, (STRIDE1, STRIDE1), ((PAD1, PAD1), (PAD1, PAD1)),
        dimension_numbers=dn1) + b1[None, :, None, None]
    v4 = jnp.where(v1 > 0, v1, v1 * NEG_SLOPE)
    dn2 = lax.conv_dimension_numbers(v4.shape, w2.shape, ("NCHW", "OIHW", "NCHW"))
    v5 = lax.conv_general_dilated(
        v4, w2, (STRIDE2, STRIDE2), ((PAD2, PAD2), (PAD2, PAD2)),
        dimension_numbers=dn2) + b2[None, :, None, None]
    return jnp.where(v5 > 0, v5, v5 * NEG_SLOPE)


if __name__ == "__main__":
    params = init_params()
    x = jax.random.normal(jax.random.PRNGKey(0), (2, 10, 16, 16), jnp.float32)
    out = model_forward(x, params["w1"], params["b1"],
                        params["w2"], params["b2"])
    jax.block_until_ready(out)
    assert out.shape == (2, 2, 5, 5), out.shape

    ref = _reference(x, params["w1"], params["b1"],
                     params["w2"], params["b2"])
    np.testing.assert_allclose(np.asarray(out), np.asarray(ref),
                               rtol=5e-2, atol=5e-2)
    print("KERNEL_OK")
</pallas_src>

<mosaic_0001>
module attributes {stable_mosaic.version = 11 : i64} {
  func.func @_fused_kernel(%arg0: i32, %arg1: memref<1x128x256xf32, #tpu.memory_space<vmem>>, %arg2: memref<256x128xf32, #tpu.memory_space<vmem>>, %arg3: memref<1x128xf32, #tpu.memory_space<vmem>>, %arg4: memref<32x128xbf16, #tpu.memory_space<vmem>>, %arg5: memref<128x128xf32, #tpu.memory_space<vmem>>, %arg6: memref<1x128xf32, #tpu.memory_space<vmem>>, %arg7: memref<1x32x128xf32, #tpu.memory_space<vmem>>) attributes {dimension_semantics = [#tpu.dimension_semantics<parallel>], iteration_bounds = array<i64: 2>, scalar_prefetch = 0 : i64, scratch_operands = 0 : i64, tpu.core_type = #tpu.core_type<tc>, window_params = [{transform_indices = @transform_0, window_bounds = array<i64: 1, 128, 256>}, {pipeline_mode = #tpu.pipeline_mode<synchronous>, transform_indices = @transform_1, window_bounds = array<i64: 256, 128>}, {pipeline_mode = #tpu.pipeline_mode<synchronous>, transform_indices = @transform_2, window_bounds = array<i64: 1, 128>}, {pipeline_mode = #tpu.pipeline_mode<synchronous>, transform_indices = @transform_3, window_bounds = array<i64: 32, 128>}, {pipeline_mode = #tpu.pipeline_mode<synchronous>, transform_indices = @transform_4, window_bounds = array<i64: 128, 128>}, {pipeline_mode = #tpu.pipeline_mode<synchronous>, transform_indices = @transform_5, window_bounds = array<i64: 1, 128>}, {transform_indices = @transform_6, window_bounds = array<i64: 1, 32, 128>}]} {
    %c0 = arith.constant 0 : index
    %c0_0 = arith.constant 0 : index
    %c0_1 = arith.constant 0 : index
    %0 = vector.load %arg1[%c0, %c0_0, %c0_1] : memref<1x128x256xf32, #tpu.memory_space<vmem>>, vector<1x128x256xf32>
    %1 = vector.shape_cast %0 : vector<1x128x256xf32> to vector<128x256xf32>
    %2 = arith.truncf %1 : vector<128x256xf32> to vector<128x256xbf16>
    %c0_2 = arith.constant 0 : index
    %c0_3 = arith.constant 0 : index
    %3 = vector.load %arg2[%c0_2, %c0_3] : memref<256x128xf32, #tpu.memory_space<vmem>>, vector<256x128xf32>
    %4 = arith.truncf %3 : vector<256x128xf32> to vector<256x128xbf16>
    %cst = arith.constant dense<0.000000e+00> : vector<128x128xf32>
    %5 = tpu.matmul %2, %4, %cst {dimension_numbers = #tpu.dot_dimension_numbers<[1], [0], [0], [1], [0, 0, 1, 1], [], []>} : vector<128x256xbf16>, vector<256x128xbf16>, vector<128x128xf32> -> vector<128x128xf32>
    %c0_4 = arith.constant 0 : index
    %c0_5 = arith.constant 0 : index
    %6 = vector.load %arg3[%c0_4, %c0_5] : memref<1x128xf32, #tpu.memory_space<vmem>>, vector<1x128xf32>
    %7 = vector.broadcast %6 : vector<1x128xf32> to vector<128x128xf32>
    %8 = arith.addf %5, %7 : vector<128x128xf32>
    %cst_6 = arith.constant 0.000000e+00 : f32
    %9 = vector.broadcast %cst_6 : f32 to vector<128x128xf32>
    %10 = arith.cmpf ogt, %8, %9 : vector<128x128xf32>
    %cst_7 = arith.constant 0.179762825 : f32
    %11 = vector.broadcast %cst_7 : f32 to vector<128x128xf32>
    %12 = arith.mulf %8, %11 : vector<128x128xf32>
    %13 = arith.select %10, %8, %12 : vector<128x128xi1>, vector<128x128xf32>
    %c0_8 = arith.constant 0 : index
    %c0_9 = arith.constant 0 : index
    %14 = vector.load %arg4[%c0_8, %c0_9] : memref<32x128xbf16, #tpu.memory_space<vmem>>, vector<32x128xbf16>
    %15 = arith.truncf %13 : vector<128x128xf32> to vector<128x128xbf16>
    %cst_10 = arith.constant dense<0.000000e+00> : vector<32x128xf32>
    %16 = tpu.matmul %14, %15, %cst_10 {dimension_numbers = #tpu.dot_dimension_numbers<[1], [0], [0], [1], [0, 0, 1, 1], [], []>} : vector<32x128xbf16>, vector<128x128xbf16>, vector<32x128xf32> -> vector<32x128xf32>
    %17 = arith.truncf %16 : vector<32x128xf32> to vector<32x128xbf16>
    %c0_11 = arith.constant 0 : index
    %c0_12 = arith.constant 0 : index
    %18 = vector.load %arg5[%c0_11, %c0_12] : memref<128x128xf32, #tpu.memory_space<vmem>>, vector<128x128xf32>
    %19 = arith.truncf %18 : vector<128x128xf32> to vector<128x128xbf16>
    %cst_13 = arith.constant dense<0.000000e+00> : vector<32x128xf32>
    %20 = tpu.matmul %17, %19, %cst_13 {dimension_numbers = #tpu.dot_dimension_numbers<[1], [0], [0], [1], [0, 0, 1, 1], [], []>} : vector<32x128xbf16>, vector<128x128xbf16>, vector<32x128xf32> -> vector<32x128xf32>
    %c0_14 = arith.constant 0 : index
    %c0_15 = arith.constant 0 : index
    %21 = vector.load %arg6[%c0_14, %c0_15] : memref<1x128xf32, #tpu.memory_space<vmem>>, vector<1x128xf32>
    %22 = vector.broadcast %21 : vector<1x128xf32> to vector<32x128xf32>
    %23 = arith.addf %20, %22 : vector<32x128xf32>
    %cst_16 = arith.constant 0.000000e+00 : f32
    %24 = vector.broadcast %cst_16 : f32 to vector<32x128xf32>
    %25 = arith.cmpf ogt, %23, %24 : vector<32x128xf32>
    %cst_17 = arith.constant 0.179762825 : f32
    %26 = vector.broadcast %cst_17 : f32 to vector<32x128xf32>
    %27 = arith.mulf %23, %26 : vector<32x128xf32>
    %28 = arith.select %25, %23, %27 : vector<32x128xi1>, vector<32x128xf32>
    %c0_18 = arith.constant 0 : index
    %c0_19 = arith.constant 0 : index
    %c0_20 = arith.constant 0 : index
    %29 = vector.load %arg7[%c0_18, %c0_19, %c0_20] : memref<1x32x128xf32, #tpu.memory_space<vmem>>, vector<1x32x128xf32>
    %30 = vector.shape_cast %29 : vector<1x32x128xf32> to vector<32x128xf32>
    %31 = vector.shape_cast %28 : vector<32x128xf32> to vector<1x32x128xf32>
    tpu.vector_store %arg7[%c0_18, %c0_19, %c0_20], %31 {strides = array<i32>} : memref<1x32x128xf32, #tpu.memory_space<vmem>>, vector<1x32x128xf32>,
    return
  }
  func.func @transform_0(%arg0: i32) -> (i32, i32, i32) {
    %c0_i32 = arith.constant 0 : i32
    %c0_i32_0 = arith.constant 0 : i32
    %c0_i32_1 = arith.constant 0 : i32
    return %arg0, %c0_i32, %c0_i32_0 : i32, i32, i32
  }
  func.func @transform_1(%arg0: i32) -> (i32, i32) {
    %c0_i32 = arith.constant 0 : i32
    %c0_i32_0 = arith.constant 0 : i32
    %c0_i32_1 = arith.constant 0 : i32
    return %c0_i32, %c0_i32_0 : i32, i32
  }
  func.func @transform_2(%arg0: i32) -> (i32, i32) {
    %c0_i32 = arith.constant 0 : i32
    %c0_i32_0 = arith.constant 0 : i32
    %c0_i32_1 = arith.constant 0 : i32
    return %c0_i32, %c0_i32_0 : i32, i32
  }
  func.func @transform_3(%arg0: i32) -> (i32, i32) {
    %c0_i32 = arith.constant 0 : i32
    %c0_i32_0 = arith.constant 0 : i32
    %c0_i32_1 = arith.constant 0 : i32
    return %c0_i32, %c0_i32_0 : i32, i32
  }
  func.func @transform_4(%arg0: i32) -> (i32, i32) {
    %c0_i32 = arith.constant 0 : i32
    %c0_i32_0 = arith.constant 0 : i32
    %c0_i32_1 = arith.constant 0 : i32
    return %c0_i32, %c0_i32_0 : i32, i32
  }
  func.func @transform_5(%arg0: i32) -> (i32, i32) {
    %c0_i32 = arith.constant 0 : i32
    %c0_i32_0 = arith.constant 0 : i32
    %c0_i32_1 = arith.constant 0 : i32
    return %c0_i32, %c0_i32_0 : i32, i32
  }
  func.func @transform_6(%arg0: i32) -> (i32, i32, i32) {
    %c0_i32 = arith.constant 0 : i32
    %c0_i32_0 = arith.constant 0 : i32
    %c0_i32_1 = arith.constant 0 : i32
    return %arg0, %c0_i32, %c0_i32_0 : i32, i32, i32
  }
}

</mosaic_0001>

<llo_original>
// kernel: model_forward.1
$region0: #{model_forward.1}
  #allocation0 [shape = 'u32[]', space=smem, size = 0x4, offset = 0x4, fixed_abs, tag = 'smem constant byte address 0x4 - core index']
  #allocation1 [shape = 'u32[72,128]{1,0:T(1,128)}', space=vmem, size = 0x9000, scoped, tag = 'internal scratch']
  %s0 = inlined_call_operand.vmem [shape: f32[2,128,256], index: 0, kind: input, shape index: {}]
  %s1 = inlined_call_operand.vmem [shape: f32[256,128], index: 1, kind: input, shape index: {}]
  %s2 = inlined_call_operand.vmem [shape: f32[1,128], index: 2, kind: input, shape index: {}]
  %s3 = inlined_call_operand.vmem [shape: bf16[32,128], index: 3, kind: input, shape index: {}]
  %s4 = inlined_call_operand.vmem [shape: f32[128,128], index: 4, kind: input, shape index: {}]
  %s5 = inlined_call_operand.vmem [shape: f32[1,128], index: 5, kind: input, shape index: {}]
  %s6 = inlined_call_operand.vmem [shape: f32[2,32,128], index: 6, kind: output, shape index: {}]
  %s7 = sld [smem:[#allocation0]]
  $region57: #{model_forward.1} parent=0
    _
  %s9 = ssub.s32 1, %s7
  %s10 = scalar_select 0, %s9, %s7
  loop: start=0, step=1, limit=4
  $region2: #{model_forward.1} parent=0 // loop_pre_header
    _
  $region3: #{model_forward.1} parent=0 // loop_header
    %s12 = sphi 0, %s16
    %p13 = scmp.ge.s32.totalorder %s12, 4
    %s22 = sphi 0, %s24
    %s25 = sphi 0, %s22
    %s26 = sphi 0, %s25
    %s42 = sphi 0, %s26
    %s46 = sphi 0, %s46
    %s48 = sphi 0, %s46
    %s49 = sphi 0, %s48
    %s63 = sphi 0, %s49
    %s67 = sphi 0, %s67
    %s69 = sphi 0, %s67
    %s70 = sphi 0, %s69
    %s84 = sphi 0, %s70
    %s88 = sphi 0, %s88
    %s90 = sphi 0, %s88
    %s91 = sphi 0, %s90
    %s105 = sphi 0, %s91
    %s109 = sphi 0, %s109
    %s111 = sphi 0, %s109
    %s112 = sphi 0, %s111
    %s126 = sphi 0, %s112
    %s130 = sphi 0, %s130
    %s132 = sphi 0, %s130
    %s133 = sphi 0, %s132
    %s147 = sphi 0, %s133
    %s153 = sphi 0, %s155
    %s156 = sphi 0, %s153
    %s157 = sphi 0, %s156
    %s173 = sphi 0, %s157
  $region4: #{model_forward.1} parent=0 // loop_header_branch
    %15 = sbr.rel (%p13) target = $region8
  $region5: #{model_forward.1} parent=0 // loop_body
    %s17 = ssub.s32 %s12, 1
    %s18 = ssub.s32 %s12, 2
    %s19 = sadd.s32 %s12, 1
    %s20 = ssub.s32 %s12, %s19
    %p21 = scmp.eq.s32.totalorder %s20, 0
    %s23 = sadd.s32 %s22, 1
    %s24 = scalar_select %p21, %s22, %s23
    %p27 = pneg %p21
    %p28 = scmp.eq.s32.totalorder %s12, 1
    %p29 = por %p27, %p28
    %p30 = scmp.ne.s32.totalorder %s22, %s25
    %p31 = scmp.eq.s32.totalorder %s12, 0
    %p32 = por %p30, %p31
    %p33 = scmp.ne.s32.totalorder %s22, %s25
    %p34 = scmp.eq.s32.totalorder %s17, 1
    %p35 = por %p33, %p34
    %p36 = scmp.ne.s32.totalorder %s25, %s26
    %p37 = scmp.eq.s32.totalorder %s17, 0
    %p38 = por %p36, %p37
    %p39 = scmp.ne.s32.totalorder %s25, %s26
    %p40 = scmp.eq.s32.totalorder %s18, 1
    %p41 = por %p39, %p40
    %p43 = scmp.ne.s32.totalorder %s26, %s42
    %p44 = scmp.eq.s32.totalorder %s18, 0
    %p45 = por %p43, %p44
    %s47 = sadd.s32 %s46, 1
    %p50 = scmp.eq.s32.totalorder %s12, 1
    %p51 = scmp.ne.s32.totalorder %s46, %s48
    %p52 = scmp.eq.s32.totalorder %s12, 0
    %p53 = por %p51, %p52
    %p54 = scmp.ne.s32.totalorder %s46, %s48
    %p55 = scmp.eq.s32.totalorder %s17, 1
    %p56 = por %p54, %p55
    %p57 = scmp.ne.s32.totalorder %s48, %s49
    %p58 = scmp.eq.s32.totalorder %s17, 0
    %p59 = por %p57, %p58
    %p60 = scmp.ne.s32.totalorder %s48, %s49
    %p61 = scmp.eq.s32.totalorder %s18, 1
    %p62 = por %p60, %p61
    %p64 = scmp.ne.s32.totalorder %s49, %s63
    %p65 = scmp.eq.s32.totalorder %s18, 0
    %p66 = por %p64, %p65
    %s68 = sadd.s32 %s67, 1
    %p71 = scmp.eq.s32.totalorder %s12, 1
    %p72 = scmp.ne.s32.totalorder %s67, %s69
    %p73 = scmp.eq.s32.totalorder %s12, 0
    %p74 = por %p72, %p73
    %p75 = scmp.ne.s32.totalorder %s67, %s69
    %p76 = scmp.eq.s32.totalorder %s17, 1
    %p77 = por %p75, %p76
    %p78 = scmp.ne.s32.totalorder %s69, %s70
    %p79 = scmp.eq.s32.totalorder %s17, 0
    %p80 = por %p78, %p79
    %p81 = scmp.ne.s32.totalorder %s69, %s70
    %p82 = scmp.eq.s32.totalorder %s18, 1
    %p83 = por %p81, %p82
    %p85 = scmp.ne.s32.totalorder %s70, %s84
    %p86 = scmp.eq.s32.totalorder %s18, 0
    %p87 = por %p85, %p86
    %s89 = sadd.s32 %s88, 1
    %p92 = scmp.eq.s32.totalorder %s12, 1
    %p93 = scmp.ne.s32.totalorder %s88, %s90
    %p94 = scmp.eq.s32.totalorder %s12, 0
    %p95 = por %p93, %p94
    %p96 = scmp.ne.s32.totalorder %s88, %s90
    %p97 = scmp.eq.s32.totalorder %s17, 1
    %p98 = por %p96, %p97
    %p99 = scmp.ne.s32.totalorder %s90, %s91
    %p100 = scmp.eq.s32.totalorder %s17, 0
    %p101 = por %p99, %p100
    %p102 = scmp.ne.s32.totalorder %s90, %s91
    %p103 = scmp.eq.s32.totalorder %s18, 1
    %p104 = por %p102, %p103
    %p106 = scmp.ne.s32.totalorder %s91, %s105
    %p107 = scmp.eq.s32.totalorder %s18, 0
    %p108 = por %p106, %p107
    %s110 = sadd.s32 %s109, 1
    %p113 = scmp.eq.s32.totalorder %s12, 1
    %p114 = scmp.ne.s32.totalorder %s109, %s111
    %p115 = scmp.eq.s32.totalorder %s12, 0
    %p116 = por %p114, %p115
    %p117 = scmp.ne.s32.totalorder %s109, %s111
    %p118 = scmp.eq.s32.totalorder %s17, 1
    %p119 = por %p117, %p118
    %p120 = scmp.ne.s32.totalorder %s111, %s112
    %p121 = scmp.eq.s32.totalorder %s17, 0
    %p122 = por %p120, %p121
    %p123 = scmp.ne.s32.totalorder %s111, %s112
    %p124 = scmp.eq.s32.totalorder %s18, 1
    %p125 = por %p123, %p124
    %p127 = scmp.ne.s32.totalorder %s112, %s126
    %p128 = scmp.eq.s32.totalorder %s18, 0
    %p129 = por %p127, %p128
    %s131 = sadd.s32 %s130, 1
    %p134 = scmp.eq.s32.totalorder %s12, 1
    %p135 = scmp.ne.s32.totalorder %s130, %s132
    %p136 = scmp.eq.s32.totalorder %s12, 0
    %p137 = por %p135, %p136
    %p138 = scmp.ne.s32.totalorder %s130, %s132
    %p139 = scmp.eq.s32.totalorder %s17, 1
    %p140 = por %p138, %p139
    %p141 = scmp.ne.s32.totalorder %s132, %s133
    %p142 = scmp.eq.s32.totalorder %s17, 0
    %p143 = por %p141, %p142
    %p144 = scmp.ne.s32.totalorder %s132, %s133
    %p145 = scmp.eq.s32.totalorder %s18, 1
    %p146 = por %p144, %p145
    %p148 = scmp.ne.s32.totalorder %s133, %s147
    %p149 = scmp.eq.s32.totalorder %s18, 0
    %p150 = por %p148, %p149
    %s151 = ssub.s32 %s12, %s19
    %p152 = scmp.eq.s32.totalorder %s151, 0
    %s154 = sadd.s32 %s153, 1
    %s155 = scalar_select %p152, %s153, %s154
    %p158 = pneg %p152
    %p159 = scmp.eq.s32.totalorder %s12, 1
    %p160 = por %p158, %p159
    %p161 = scmp.ne.s32.totalorder %s153, %s156
    %p162 = scmp.eq.s32.totalorder %s12, 0
    %p163 = por %p161, %p162
    %p164 = scmp.ne.s32.totalorder %s153, %s156
    %p165 = scmp.eq.s32.totalorder %s17, 1
    %p166 = por %p164, %p165
    %p167 = scmp.ne.s32.totalorder %s156, %s157
    %p168 = scmp.eq.s32.totalorder %s17, 0
    %p169 = por %p167, %p168
    %p170 = scmp.ne.s32.totalorder %s156, %s157
    %p171 = scmp.eq.s32.totalorder %s18, 1
    %p172 = por %p170, %p171
    %p174 = scmp.ne.s32.totalorder %s157, %s173
    %p175 = scmp.eq.s32.totalorder %s18, 0
    %p176 = por %p174, %p175
    %p177 = scmp.le.s32.totalorder 1, %s12
    %p178 = scmp.lt.s32.totalorder %s12, 3
    %p179 = pnand %p177, %p178
    %p180 = pneg %p179
    // Predicated region
    $region9: #{model_forward.1} parent=5 // pred_check
      _
    $region10: #{model_forward.1} parent=5 // pred_check_branch
      %182 = sbr.rel (%p179) target = $region12
    $region11: #{model_forward.1} parent=5 // pred_region
      %s183 = ssub.s32 %s12, 1
      // Predicated region
      $region13: #{model_forward.1} parent=11 // pred_check
        %p184 = pneg %p59
      $region14: #{model_forward.1} parent=11 // pred_check_branch
        %186 = sbr.rel (%p184) target = $region16
      $region15: #{model_forward.1} parent=11 // pred_region
        _
      $region16: #{model_forward.1} parent=11 // pred_fallthru
        _
      // Predicated region
      $region17: #{model_forward.1} parent=11 // pred_check
        %p187 = pneg %p80
      $region18: #{model_forward.1} parent=11 // pred_check_branch
        %189 = sbr.rel (%p187) target = $region20
      $region19: #{model_forward.1} parent=11 // pred_region
        _
      $region20: #{model_forward.1} parent=11 // pred_fallthru
        _
      // Predicated region
      $region21: #{model_forward.1} parent=11 // pred_check
        %p190 = pneg %p101
      $region22: #{model_forward.1} parent=11 // pred_check_branch
        %192 = sbr.rel (%p190) target = $region24
      $region23: #{model_forward.1} parent=11 // pred_region
        _
      $region24: #{model_forward.1} parent=11 // pred_fallthru
        _
      // Predicated region
      $region25: #{model_forward.1} parent=11 // pred_check
        %p193 = pneg %p122
      $region26: #{model_forward.1} parent=11 // pred_check_branch
        %195 = sbr.rel (%p193) target = $region28
      $region27: #{model_forward.1} parent=11 // pred_region
        _
      $region28: #{model_forward.1} parent=11 // pred_fallthru
        _
      // Predicated region
      $region29: #{model_forward.1} parent=11 // pred_check
        %p196 = pneg %p143
      $region30: #{model_forward.1} parent=11 // pred_check_branch
        %198 = sbr.rel (%p196) target = $region32
      $region31: #{model_forward.1} parent=11 // pred_region
        _
      $region32: #{model_forward.1} parent=11 // pred_fallthru
        _
    $region12: #{model_forward.1} parent=5 // pred_fallthru
      _
    %p199 = scmp.lt.s32.totalorder %s12, 2
    // Predicated region
    $region33: #{model_forward.1} parent=5 // pred_check
      %p200 = pneg %p199
    $region34: #{model_forward.1} parent=5 // pred_check_branch
      %202 = sbr.rel (%p200) target = $region36
    $region35: #{model_forward.1} parent=5 // pred_region
      // Predicated region
      $region37: #{model_forward.1} parent=35 // pred_check
        %p203 = pneg %p32
      $region38: #{model_forward.1} parent=35 // pred_check_branch
        %205 = sbr.rel (%p203) target = $region40
      $region39: #{model_forward.1} parent=35 // pred_region
        %p206 = scmp.lt.s32.totalorder %s12, 1
        %s207 = scalar_select %p206, %s12, 1
        %s208 = smul.addr %s207, 32
        %s209 = smul.addr %s208, 8
        %s210 = scalar_lea.vmem %s0, %s209
      $region40: #{model_forward.1} parent=35 // pred_fallthru
        _
    $region36: #{model_forward.1} parent=5 // pred_fallthru
      _
    %p211 = scmp.le.s32.totalorder 1, %s12
    %p212 = scmp.lt.s32.totalorder %s12, 3
    %p213 = pnand %p211, %p212
    %p214 = pneg %p213
    // Predicated region
    $region41: #{model_forward.1} parent=5 // pred_check
      _
    $region42: #{model_forward.1} parent=5 // pred_check_branch
      %216 = sbr.rel (%p213) target = $region44
    $region43: #{model_forward.1} parent=5 // pred_region
      %s217 = ssub.s32 %s12, 1
      %p218 = scmp.lt.s32.totalorder %s17, 1
      %s219 = scalar_select %p218, %s17, 1
      %s220 = smul.addr %s219, 32
      %s221 = smul.addr %s220, 8
      %s222 = scalar_lea.vmem %s0, %s221
      %p223 = pneg %p38
      %p224 = pneg %p35
      %p225 = pneg %p59
      %p226 = pneg %p56
      %p227 = pneg %p80
      %p228 = pneg %p77
      %p229 = pneg %p101
      %p230 = pneg %p98
      %p231 = pneg %p122
      %p232 = pneg %p119
      %p233 = pneg %p143
      %p234 = pneg %p140
      %p235 = pneg %p169
      %p236 = pneg %p166
      %p237 = scmp.lt.s32.totalorder %s17, 1
      %s238 = scalar_select %p237, %s17, 1
      %s239 = smul.addr %s238, 4
      %s240 = smul.addr %s239, 8
      %s241 = scalar_lea.vmem %s6, %s240
      %p242 = scmp.lt.s32.totalorder %s17, 1
      %s243 = scalar_select %p242, %s17, 1
      %s244 = smul.addr %s243, 32
      %s245 = smul.addr %s244, 8
      %s246 = scalar_lea.vmem %s0, %s245
      %p247 = scmp.lt.s32.totalorder %s17, 1
      %s248 = scalar_select %p247, %s17, 1
      %s249 = smul.addr %s248, 4
      %s250 = smul.addr %s249, 8
      %s251 = scalar_lea.vmem %s6, %s250
      %v252 = vld [vmem:[%s246] sm:$0xff]
      %v253 = vld [vmem:[%s246 + $0x8] sm:$0xff]
      %v254 = vld [vmem:[%s246 + $0x10] sm:$0xff]
      %v255 = vld [vmem:[%s246 + $0x18] sm:$0xff]
      %v256 = vld [vmem:[%s246 + $0x20] sm:$0xff]
      %v257 = vld [vmem:[%s246 + $0x28] sm:$0xff]
      %v258 = vld [vmem:[%s246 + $0x30] sm:$0xff]
      %v259 = vld [vmem:[%s246 + $0x38] sm:$0xff]
      %v260 = vld [vmem:[%s246 + $0x40] sm:$0xff]
      %v261 = vld [vmem:[%s246 + $0x48] sm:$0xff]
      %v262 = vld [vmem:[%s246 + $0x50] sm:$0xff]
      %v263 = vld [vmem:[%s246 + $0x58] sm:$0xff]
      %v264 = vld [vmem:[%s246 + $0x60] sm:$0xff]
      %v265 = vld [vmem:[%s246 + $0x68] sm:$0xff]
      %v266 = vld [vmem:[%s246 + $0x70] sm:$0xff]
      %v267 = vld [vmem:[%s246 + $0x78] sm:$0xff]
      %v268 = vld [vmem:[%s246 + $0x80] sm:$0xff]
      %v269 = vld [vmem:[%s246 + $0x88] sm:$0xff]
      %v270 = vld [vmem:[%s246 + $0x90] sm:$0xff]
      %v271 = vld [vmem:[%s246 + $0x98] sm:$0xff]
      %v272 = vld [vmem:[%s246 + $0xa0] sm:$0xff]
      %v273 = vld [vmem:[%s246 + $0xa8] sm:$0xff]
      %v274 = vld [vmem:[%s246 + $0xb0] sm:$0xff]
      %v275 = vld [vmem:[%s246 + $0xb8] sm:$0xff]
      %v276 = vld [vmem:[%s246 + $0xc0] sm:$0xff]
      %v277 = vld [vmem:[%s246 + $0xc8] sm:$0xff]
      %v278 = vld [vmem:[%s246 + $0xd0] sm:$0xff]
      %v279 = vld [vmem:[%s246 + $0xd8] sm:$0xff]
      %v280 = vld [vmem:[%s246 + $0xe0] sm:$0xff]
      %v281 = vld [vmem:[%s246 + $0xe8] sm:$0xff]
      %v282 = vld [vmem:[%s246 + $0xf0] sm:$0xff]
      %v283 = vld [vmem:[%s246 + $0xf8] sm:$0xff]
      %v284 = vpack.c.bf16 %v254, %v252
      %v285 = vpack.c.bf16 %v255, %v253
      %v286 = vpack.c.bf16 %v258, %v256
      %v287 = vpack.c.bf16 %v259, %v257
      %v288 = vpack.c.bf16 %v262, %v260
      %v289 = vpack.c.bf16 %v263, %v261
      %v290 = vpack.c.bf16 %v266, %v264
      %v291 = vpack.c.bf16 %v267, %v265
      %v292 = vpack.c.bf16 %v270, %v268
      %v293 = vpack.c.bf16 %v271, %v269
      %v294 = vpack.c.bf16 %v274, %v272
      %v295 = vpack.c.bf16 %v275, %v273
      %v296 = vpack.c.bf16 %v278, %v276
      %v297 = vpack.c.bf16 %v279, %v277
      %v298 = vpack.c.bf16 %v282, %v280
      %v299 = vpack.c.bf16 %v283, %v281
      %v300 = vld [vmem:[%s1] sm:$0xff]
      %v301 = vld [vmem:[%s1 + $0x8] sm:$0xff]
      %v302 = vld [vmem:[%s1 + $0x10] sm:$0xff]
      %v303 = vld [vmem:[%s1 + $0x18] sm:$0xff]
      %v304 = vld [vmem:[%s1 + $0x20] sm:$0xff]
      %v305 = vld [vmem:[%s1 + $0x28] sm:$0xff]
      %v306 = vld [vmem:[%s1 + $0x30] sm:$0xff]
      %v307 = vld [vmem:[%s1 + $0x38] sm:$0xff]
      %v308 = vld [vmem:[%s1 + $0x40] sm:$0xff]
      %v309 = vld [vmem:[%s1 + $0x48] sm:$0xff]
      %v310 = vld [vmem:[%s1 + $0x50] sm:$0xff]
      %v311 = vld [vmem:[%s1 + $0x58] sm:$0xff]
      %v312 = vld [vmem:[%s1 + $0x60] sm:$0xff]
      %v313 = vld [vmem:[%s1 + $0x68] sm:$0xff]
      %v314 = vld [vmem:[%s1 + $0x70] sm:$0xff]
      %v315 = vld [vmem:[%s1 + $0x78] sm:$0xff]
      %v316 = vld [vmem:[%s1 + $0x80] sm:$0xff]
      %v317 = vld [vmem:[%s1 + $0x88] sm:$0xff]
      %v318 = vld [vmem:[%s1 + $0x90] sm:$0xff]
      %v319 = vld [vmem:[%s1 + $0x98] sm:$0xff]
      %v320 = vld [vmem:[%s1 + $0xa0] sm:$0xff]
      %v321 = vld [vmem:[%s1 + $0xa8] sm:$0xff]
      %v322 = vld [vmem:[%s1 + $0xb0] sm:$0xff]
      %v323 = vld [vmem:[%s1 + $0xb8] sm:$0xff]
      %v324 = vld [vmem:[%s1 + $0xc0] sm:$0xff]
      %v325 = vld [vmem:[%s1 + $0xc8] sm:$0xff]
      %v326 = vld [vmem:[%s1 + $0xd0] sm:$0xff]
      %v327 = vld [vmem:[%s1 + $0xd8] sm:$0xff]
      %v328 = vld [vmem:[%s1 + $0xe0] sm:$0xff]
      %v329 = vld [vmem:[%s1 + $0xe8] sm:$0xff]
      %v330 = vld [vmem:[%s1 + $0xf0] sm:$0xff]
      %v331 = vld [vmem:[%s1 + $0xf8] sm:$0xff]
      %v332 = vpack.c.bf16 %v301, %v300
      %v333 = vpack.c.bf16 %v303, %v302
      %v334 = vpack.c.bf16 %v305, %v304
      %v335 = vpack.c.bf16 %v307, %v306
      %v336 = vpack.c.bf16 %v309, %v308
      %v337 = vpack.c.bf16 %v311, %v310
      %v338 = vpack.c.bf16 %v313, %v312
      %v339 = vpack.c.bf16 %v315, %v314
      %v340 = vpack.c.bf16 %v317, %v316
      %v341 = vpack.c.bf16 %v319, %v318
      %v342 = vpack.c.bf16 %v321, %v320
      %v343 = vpack.c.bf16 %v323, %v322
      %v344 = vpack.c.bf16 %v325, %v324
      %v345 = vpack.c.bf16 %v327, %v326
      %v346 = vpack.c.bf16 %v329, %v328
      %v347 = vpack.c.bf16 %v331, %v330
      %v348 = vld [vmem:[%s2] sm:$0x1]
      %v350 = vperm.slane %v348, 0
      %352 = vmatpush.bf16.msra.mxu0 %v339
      %353 = vmatpush.bf16.msra.mxu0 %v338
      %354 = vmatpush.bf16.msra.mxu0 %v337
      %355 = vmatpush.bf16.msra.mxu0 %v336
      %356 = vmatpush.bf16.msra.mxu0 %v335
      %357 = vmatpush.bf16.msra.mxu0 %v334
      %358 = vmatpush.bf16.msra.mxu0 %v333
      %359 = vmatpush.bf16.msra.mxu0 %v332
      %360 = vmatmul.bf16.gmra.mxu0 %v284
      %v361 = vpop.f32.mrf.mxu0
      %v362 = vadd.f32 %v350, %v361
      %v363 = vpop.f32.mrf.mxu0
      %v364 = vadd.f32 %v350, %v363
      %365 = vmatmul.bf16.gmra.mxu0 %v286
      %v366 = vpop.f32.mrf.mxu0
      %v367 = vadd.f32 %v350, %v366
      %v368 = vpop.f32.mrf.mxu0
      %v369 = vadd.f32 %v350, %v368
      %370 = vmatmul.bf16.gmra.mxu0 %v288
      %v371 = vpop.f32.mrf.mxu0
      %v372 = vadd.f32 %v350, %v371
      %v373 = vpop.f32.mrf.mxu0
      %v374 = vadd.f32 %v350, %v373
      %375 = vmatmul.bf16.gmra.mxu0 %v290
      %v376 = vpop.f32.mrf.mxu0
      %v377 = vadd.f32 %v350, %v376
      %v378 = vpop.f32.mrf.mxu0
      %v379 = vadd.f32 %v350, %v378
      %380 = vmatmul.bf16.gmra.mxu0 %v292
      %v381 = vpop.f32.mrf.mxu0
      %v382 = vadd.f32 %v350, %v381
      %v383 = vpop.f32.mrf.mxu0
      %v384 = vadd.f32 %v350, %v383
      %385 = vmatmul.bf16.gmra.mxu0 %v294
      %v386 = vpop.f32.mrf.mxu0
      %v387 = vadd.f32 %v350, %v386
      %v388 = vpop.f32.mrf.mxu0
      %v389 = vadd.f32 %v350, %v388
      %390 = vmatmul.bf16.gmra.mxu0 %v296
      %v391 = vpop.f32.mrf.mxu0
      %v392 = vadd.f32 %v350, %v391
      %v393 = vpop.f32.mrf.mxu0
      %v394 = vadd.f32 %v350, %v393
      %395 = vmatmul.bf16.gmra.mxu0 %v298
      %v396 = vpop.f32.mrf.mxu0
      %v397 = vadd.f32 %v350, %v396
      %v398 = vpop.f32.mrf.mxu0
      %v399 = vadd.f32 %v350, %v398
      %400 = vdwg.mxu0
      %401 = vmatpush.bf16.msra.mxu0 %v347
      %402 = vmatpush.bf16.msra.mxu0 %v346
      %403 = vmatpush.bf16.msra.mxu0 %v345
      %404 = vmatpush.bf16.msra.mxu0 %v344
      %405 = vmatpush.bf16.msra.mxu0 %v343
      %406 = vmatpush.bf16.msra.mxu0 %v342
      %407 = vmatpush.bf16.msra.mxu0 %v341
      %408 = vmatpush.bf16.msra.mxu0 %v340
      %409 = vmatmul.bf16.gmra.mxu0 %v285
      %v410 = vpop.f32.mrf.mxu0
      %v411 = vadd.f32 %v362, %v410
      %v412 = vpop.f32.mrf.mxu0
      %v413 = vadd.f32 %v364, %v412
      %414 = vmatmul.bf16.gmra.mxu0 %v287
      %v415 = vpop.f32.mrf.mxu0
      %v416 = vadd.f32 %v367, %v415
      %v417 = vpop.f32.mrf.mxu0
      %v418 = vadd.f32 %v369, %v417
      %419 = vmatmul.bf16.gmra.mxu0 %v289
      %v420 = vpop.f32.mrf.mxu0
      %v421 = vadd.f32 %v372, %v420
      %v422 = vpop.f32.mrf.mxu0
      %v423 = vadd.f32 %v374, %v422
      %424 = vmatmul.bf16.gmra.mxu0 %v291
      %v425 = vpop.f32.mrf.mxu0
      %v426 = vadd.f32 %v377, %v425
      %v427 = vpop.f32.mrf.mxu0
      %v428 = vadd.f32 %v379, %v427
      %429 = vmatmul.bf16.gmra.mxu0 %v293
      %v430 = vpop.f32.mrf.mxu0
      %v431 = vadd.f32 %v382, %v430
      %v432 = vpop.f32.mrf.mxu0
      %v433 = vadd.f32 %v384, %v432
      %434 = vmatmul.bf16.gmra.mxu0 %v295
      %v435 = vpop.f32.mrf.mxu0
      %v436 = vadd.f32 %v387, %v435
      %v437 = vpop.f32.mrf.mxu0
      %v438 = vadd.f32 %v389, %v437
      %439 = vmatmul.bf16.gmra.mxu0 %v297
      %v440 = vpop.f32.mrf.mxu0
      %v441 = vadd.f32 %v392, %v440
      %v442 = vpop.f32.mrf.mxu0
      %v443 = vadd.f32 %v394, %v442
      %444 = vmatmul.bf16.gmra.mxu0 %v299
      %v445 = vpop.f32.mrf.mxu0
      %v446 = vadd.f32 %v397, %v445
      %v447 = vpop.f32.mrf.mxu0
      %v448 = vadd.f32 %v399, %v447
      %449 = vdwg.mxu0
      %vm450 = vcmp.gt.f32.partialorder %v411, 0.0
      %vm451 = vcmp.gt.f32.partialorder %v413, 0.0
      %vm452 = vcmp.gt.f32.partialorder %v416, 0.0
      %vm453 = vcmp.gt.f32.partialorder %v418, 0.0
      %vm454 = vcmp.gt.f32.partialorder %v421, 0.0
      %vm455 = vcmp.gt.f32.partialorder %v423, 0.0
      %vm456 = vcmp.gt.f32.partialorder %v426, 0.0
      %vm457 = vcmp.gt.f32.partialorder %v428, 0.0
      %vm458 = vcmp.gt.f32.partialorder %v431, 0.0
      %vm459 = vcmp.gt.f32.partialorder %v433, 0.0
      %vm460 = vcmp.gt.f32.partialorder %v436, 0.0
      %vm461 = vcmp.gt.f32.partialorder %v438, 0.0
      %vm462 = vcmp.gt.f32.partialorder %v441, 0.0
      %vm463 = vcmp.gt.f32.partialorder %v443, 0.0
      %vm464 = vcmp.gt.f32.partialorder %v446, 0.0
      %vm465 = vcmp.gt.f32.partialorder %v448, 0.0
      %v466 = vmul.f32 %v411, 0.17976283
      %v467 = vmul.f32 %v413, 0.17976283
      %v468 = vmul.f32 %v416, 0.17976283
      %v469 = vmul.f32 %v418, 0.17976283
      %v470 = vmul.f32 %v421, 0.17976283
      %v471 = vmul.f32 %v423, 0.17976283
      %v472 = vmul.f32 %v426, 0.17976283
      %v473 = vmul.f32 %v428, 0.17976283
      %v474 = vmul.f32 %v431, 0.17976283
      %v475 = vmul.f32 %v433, 0.17976283
      %v476 = vmul.f32 %v436, 0.17976283
      %v477 = vmul.f32 %v438, 0.17976283
      %v478 = vmul.f32 %v441, 0.17976283
      %v479 = vmul.f32 %v443, 0.17976283
      %v480 = vmul.f32 %v446, 0.17976283
      %v481 = vmul.f32 %v448, 0.17976283
      %v482 = vsel %vm450, %v411, %v466
      %v483 = vsel %vm451, %v413, %v467
      %v484 = vsel %vm452, %v416, %v468
      %v485 = vsel %vm453, %v418, %v469
      %v486 = vsel %vm454, %v421, %v470
      %v487 = vsel %vm455, %v423, %v471
      %v488 = vsel %vm456, %v426, %v472
      %v489 = vsel %vm457, %v428, %v473
      %v490 = vsel %vm458, %v431, %v474
      %v491 = vsel %vm459, %v433, %v475
      %v492 = vsel %vm460, %v436, %v476
      %v493 = vsel %vm461, %v438, %v477
      %v494 = vsel %vm462, %v441, %v478
      %v495 = vsel %vm463, %v443, %v479
      %v496 = vsel %vm464, %v446, %v480
      %v497 = vsel %vm465, %v448, %v481
      %v498 = vld [vmem:[%s3] sm:$0xf]
      %v499 = vld [vmem:[%s3 + $0x4] sm:$0xf]
      %v500 = vld [vmem:[%s3 + $0x8] sm:$0xf]
      %v501 = vld [vmem:[%s3 + $0xc] sm:$0xf]
      %v502 = vpack.c.bf16 %v483, %v482
      %v503 = vpack.c.bf16 %v485, %v484
      %v504 = vpack.c.bf16 %v487, %v486
      %v505 = vpack.c.bf16 %v489, %v488
      %v506 = vpack.c.bf16 %v491, %v490
      %v507 = vpack.c.bf16 %v493, %v492
      %v508 = vpack.c.bf16 %v495, %v494
      %v509 = vpack.c.bf16 %v497, %v496
      %v514 = vunpack.c.l.b16 %v498
      %v515 = vunpack.c.l.b16 %v499
      %v516 = vunpack.c.l.b16 %v500
      %v517 = vunpack.c.l.b16 %v501
      %v518 = vpack.c.b16 %v515, %v514
      %v519 = vpack.c.b16 %v517, %v516
      %522 = vmatpush.bf16.msra.mxu0 %v509
      %523 = vmatpush.bf16.msra.mxu0 %v508
      %524 = vmatpush.bf16.msra.mxu0 %v507
      %525 = vmatpush.bf16.msra.mxu0 %v506
      %526 = vmatpush.bf16.msra.mxu0 %v505
      %527 = vmatpush.bf16.msra.mxu0 %v504
      %528 = vmatpush.bf16.msra.mxu0 %v503
      %529 = vmatpush.bf16.msra.mxu0 %v502
      %530 = vmatmul.bf16.gmra.mxu0 %v518
      %v531 = vpop.f32.mrf.mxu0
      %v532 = vadd.f32 0.0, %v531
      %v533 = vpop.f32.mrf.mxu0
      %v534 = vadd.f32 0.0, %v533
      %535 = vmatmul.bf16.gmra.mxu0 %v519
      %v536 = vpop.f32.mrf.mxu0
      %v537 = vadd.f32 0.0, %v536
      %v538 = vpop.f32.mrf.mxu0
      %v539 = vadd.f32 0.0, %v538
      %540 = vdwg.mxu0
      %v541 = vpack.c.bf16 %v534, %v532
      %v542 = vpack.c.bf16 %v539, %v537
      %v543 = vld [vmem:[%s4] sm:$0xff]
      %v544 = vld [vmem:[%s4 + $0x8] sm:$0xff]
      %v545 = vld [vmem:[%s4 + $0x10] sm:$0xff]
      %v546 = vld [vmem:[%s4 + $0x18] sm:$0xff]
      %v547 = vld [vmem:[%s4 + $0x20] sm:$0xff]
      %v548 = vld [vmem:[%s4 + $0x28] sm:$0xff]
      %v549 = vld [vmem:[%s4 + $0x30] sm:$0xff]
      %v550 = vld [vmem:[%s4 + $0x38] sm:$0xff]
      %v551 = vld [vmem:[%s4 + $0x40] sm:$0xff]
      %v552 = vld [vmem:[%s4 + $0x48] sm:$0xff]
      %v553 = vld [vmem:[%s4 + $0x50] sm:$0xff]
      %v554 = vld [vmem:[%s4 + $0x58] sm:$0xff]
      %v555 = vld [vmem:[%s4 + $0x60] sm:$0xff]
      %v556 = vld [vmem:[%s4 + $0x68] sm:$0xff]
      %v557 = vld [vmem:[%s4 + $0x70] sm:$0xff]
      %v558 = vld [vmem:[%s4 + $0x78] sm:$0xff]
      %v559 = vpack.c.bf16 %v544, %v543
      %v560 = vpack.c.bf16 %v546, %v545
      %v561 = vpack.c.bf16 %v548, %v547
      %v562 = vpack.c.bf16 %v550, %v549
      %v563 = vpack.c.bf16 %v552, %v551
      %v564 = vpack.c.bf16 %v554, %v553
      %v565 = vpack.c.bf16 %v556, %v555
      %v566 = vpack.c.bf16 %v558, %v557
      %v567 = vld [vmem:[%s5] sm:$0x1]
      %v569 = vperm.slane %v567, 0
      %571 = vmatpush.bf16.msra.mxu0 %v566
      %572 = vmatpush.bf16.msra.mxu0 %v565
      %573 = vmatpush.bf16.msra.mxu0 %v564
      %574 = vmatpush.bf16.msra.mxu0 %v563
      %575 = vmatpush.bf16.msra.mxu0 %v562
      %576 = vmatpush.bf16.msra.mxu0 %v561
      %577 = vmatpush.bf16.msra.mxu0 %v560
      %578 = vmatpush.bf16.msra.mxu0 %v559
      %579 = vmatmul.bf16.gmra.mxu0 %v541
      %v580 = vpop.f32.mrf.mxu0
      %v581 = vadd.f32 %v569, %v580
      %v582 = vpop.f32.mrf.mxu0
      %v583 = vadd.f32 %v569, %v582
      %584 = vmatmul.bf16.gmra.mxu0 %v542
      %v585 = vpop.f32.mrf.mxu0
      %v586 = vadd.f32 %v569, %v585
      %v587 = vpop.f32.mrf.mxu0
      %v588 = vadd.f32 %v569, %v587
      %589 = vdwg.mxu0
      %vm590 = vcmp.gt.f32.partialorder %v581, 0.0
      %vm591 = vcmp.gt.f32.partialorder %v583, 0.0
      %vm592 = vcmp.gt.f32.partialorder %v586, 0.0
      %vm593 = vcmp.gt.f32.partialorder %v588, 0.0
      %v594 = vmul.f32 %v581, 0.17976283
      %v595 = vmul.f32 %v583, 0.17976283
      %v596 = vmul.f32 %v586, 0.17976283
      %v597 = vmul.f32 %v588, 0.17976283
      %v598 = vsel %vm590, %v581, %v594
      %v599 = vsel %vm591, %v583, %v595
      %v600 = vsel %vm592, %v586, %v596
      %v601 = vsel %vm593, %v588, %v597
      %602 = vst [vmem:[%s251] sm:$0xff] %v598
      %603 = vst [vmem:[%s251 + $0x8] sm:$0xff] %v599
      %604 = vst [vmem:[%s251 + $0x10] sm:$0xff] %v600
      %605 = vst [vmem:[%s251 + $0x18] sm:$0xff] %v601
      %p606 = scmp.lt.s32.totalorder %s17, 1
      %s607 = scalar_select %p606, %s17, 1
      %s608 = smul.addr %s607, 4
      %s609 = smul.addr %s608, 8
      %s610 = scalar_lea.vmem %s6, %s609
      // Predicated region
      $region45: #{model_forward.1} parent=43 // pred_check
        %p611 = pneg %p166
      $region46: #{model_forward.1} parent=43 // pred_check_branch
        %613 = sbr.rel (%p611) target = $region48
      $region47: #{model_forward.1} parent=43 // pred_region
        _
      $region48: #{model_forward.1} parent=43 // pred_fallthru
        _
    $region44: #{model_forward.1} parent=5 // pred_fallthru
      _
    %p614 = scmp.le.s32.totalorder 2, %s12
    // Predicated region
    $region49: #{model_forward.1} parent=5 // pred_check
      %p615 = pneg %p614
    $region50: #{model_forward.1} parent=5 // pred_check_branch
      %617 = sbr.rel (%p615) target = $region52
    $region51: #{model_forward.1} parent=5 // pred_region
      %s618 = ssub.s32 %s12, 2
      // Predicated region
      $region53: #{model_forward.1} parent=51 // pred_check
        %p619 = pneg %p172
      $region54: #{model_forward.1} parent=51 // pred_check_branch
        %621 = sbr.rel (%p619) target = $region56
      $region55: #{model_forward.1} parent=51 // pred_region
        %p622 = scmp.lt.s32.totalorder %s18, 1
        %s623 = scalar_select %p622, %s18, 1
        %s624 = smul.addr %s623, 4
        %s625 = smul.addr %s624, 8
        %s626 = scalar_lea.vmem %s6, %s625
      $region56: #{model_forward.1} parent=51 // pred_fallthru
        _
    $region52: #{model_forward.1} parent=5 // pred_fallthru
      _
  $region6: #{model_forward.1} parent=0 // loop_footer
    %s16 = sadd.s32 1, %s12
  $region7: #{model_forward.1} parent=0 // loop_footer_branch
    %11 = sbr.rel target = $region3
  $region8: #{model_forward.1} parent=0 // loop_exit
    _

</llo_original>
